<compile_context>
chip_gen: v7x
topology: tpu7x:2x2x1
jax: 0.10.0
libtpu: 0.0.40
codegen_flags: <defaults>
</compile_context>

<pallas_src>
import jax
import jax.numpy as jnp
from jax.experimental import pallas as pl
from jax.experimental.pallas import tpu as pltpu


# ------------------------------ fused kernel --------------------------------

def make_encoder_kernel(h_dims, z_dim, out_width):
    """Kernel ref layout:
       inputs : x, w_0, ..., w_{L-1}, w_z, p_packed
                p_packed rows = [gamma_0, beta_0, ..., gamma_{L-1}, beta_{L-1}, b_z]
       output : one (N, out_width) slab = [h_0 | h_1 | ... | z | zero pad]
    """
    n_hidden = len(h_dims)

    def kernel(*refs):
        x_ref = refs[0]
        w_refs = refs[1:1 + n_hidden]
        wz_ref = refs[1 + n_hidden]
        p_ref = refs[2 + n_hidden]
        out_ref = refs[3 + n_hidden]

        a = x_ref[...].astype(jnp.float32)
        n_rows = a.shape[0]
        inv_n = jnp.float32(1.0 / n_rows)
        p = p_ref[...]                               # (2L+1, Fmax), f32

        pieces = []
        for i in range(n_hidden):
            f = h_dims[i]
            # bf16 MXU matmul with f32 accumulation.  The hidden-layer Linear
            # bias is intentionally omitted: it is exactly cancelled by the BN
            # mean subtraction below.
            y = jnp.dot(a.astype(jnp.bfloat16), w_refs[i][...],
                        preferred_element_type=jnp.float32)

            # One-pass BatchNorm1d statistics (training mode, biased var), f32.
            s1 = jnp.sum(y, axis=0, keepdims=True)
            s2 = jnp.sum(y * y, axis=0, keepdims=True)
            mean = s1 * inv_n
            var = jnp.maximum(s2 * inv_n - mean * mean, 0.0)  # clamp cancellation

            # Fold BN into per-feature scale/shift (cheap (1,F) row math),
            # then fuse with ReLU on the (N,F) block.
            gamma = p[2 * i:2 * i + 1, :f]
            beta = p[2 * i + 1:2 * i + 2, :f]
            scale = gamma * jax.lax.rsqrt(var + 1e-5)
            shift = beta - mean * scale
            a = jnp.maximum(y * scale + shift, 0.0)
            pieces.append(a)

        bz = p[2 * n_hidden:2 * n_hidden + 1, :z_dim]
        z = jnp.dot(a.astype(jnp.bfloat16), wz_ref[...],
                    preferred_element_type=jnp.float32) + bz
        pieces.append(z)

        total = sum(h_dims) + z_dim
        if out_width > total:
            pieces.append(jnp.zeros((n_rows, out_width - total), jnp.float32))
        # Single lane-dense store: out_width is a multiple of 128 lanes.
        out_ref[...] = jnp.concatenate(pieces, axis=1)

    return kernel


# ------------------------------ host wrapper ---------------------------------

def encoder_forward(params, x):
    """Returns (en_h, z) exactly like Encoder.forward(x) (training-mode BN)."""
    h_dims = [int(layer["w"].shape[1]) for layer in params["hidden"]]
    z_dim = int(params["z_layer"]["w"].shape[1])
    n = x.shape[0]

    total = sum(h_dims) + z_dim
    out_width = ((total + 127) // 128) * 128
    f_max = max(h_dims + [z_dim])

    # Weights cast once on the host -> MXU-native bf16, half the DMA bytes.
    w_inputs = [layer["w"].astype(jnp.bfloat16) for layer in params["hidden"]]
    wz = params["z_layer"]["w"].astype(jnp.bfloat16)

    # Coalesce all per-feature params into ONE small f32 operand.
    def pad_row(v):
        v = jnp.asarray(v, jnp.float32).reshape(1, -1)
        return jnp.pad(v, ((0, 0), (0, f_max - v.shape[1])))

    rows = []
    for layer in params["hidden"]:
        rows.append(pad_row(layer["gamma"]))
        rows.append(pad_row(layer["beta"]))
    rows.append(pad_row(params["z_layer"]["b"]))
    p_packed = jnp.concatenate(rows, axis=0)            # (2L+1, Fmax)

    inputs = [x] + w_inputs + [wz, p_packed]

    # Cost estimate for XLA scheduling around the tiny custom call.
    flops = 0
    transcendentals = 0
    bytes_accessed = x.size * 4 + p_packed.size * 4 + n * out_width * 4
    fin = x.shape[1]
    for layer, fout in zip(params["hidden"], h_dims):
        flops += 2 * n * fin * fout + 8 * n * fout
        transcendentals += fout                          # rsqrt per feature
        bytes_accessed += layer["w"].size * 2            # bf16 weights
        fin = fout
    flops += 2 * n * fin * z_dim + n * z_dim
    bytes_accessed += wz.size * 2

    vmem = pl.BlockSpec(memory_space=pltpu.MemorySpace.VMEM)

    out = pl.pallas_call(
        make_encoder_kernel(tuple(h_dims), z_dim, out_width),
        out_shape=jax.ShapeDtypeStruct((n, out_width), jnp.float32),
        in_specs=[vmem] * len(inputs),
        out_specs=vmem,
        compiler_params=pltpu.CompilerParams(vmem_limit_bytes=32 * 1024 * 1024),
        cost_estimate=pl.CostEstimate(
            flops=int(flops),
            transcendentals=int(transcendentals),
            bytes_accessed=int(bytes_accessed),
        ),
    )(*inputs)

    en_h = []
    off = 0
    for f in h_dims:
        en_h.append(out[:, off:off + f])
        off += f
    z = out[:, off:off + z_dim]
    return en_h, z


# ----------------------------- parameter setup -------------------------------

def xavier_normal(key, fan_in, fan_out):
    std = (2.0 / (fan_in + fan_out)) ** 0.5
    # stored as (in, out) so every layer is y = x @ W (+ b)
    return std * jax.random.normal(key, (fan_in, fan_out), dtype=jnp.float32)


def init_encoder_params(key, dims):
    x_dim, h_dims, z_dim = dims
    params = {"hidden": []}
    sizes = [x_dim] + list(h_dims)
    for i in range(len(h_dims)):
        key, kw, kb = jax.random.split(key, 3)
        fin, fout = sizes[i], sizes[i + 1]
        params["hidden"].append({
            "w": xavier_normal(kw, fin, fout),
            # Nonzero bias on purpose: kernel drops it (BN cancels it exactly),
            # the reference keeps it -> the check verifies the cancellation.
            "b": 0.1 * jax.random.normal(kb, (1, fout), dtype=jnp.float32),
            "gamma": jnp.ones((fout,), jnp.float32),     # fresh BatchNorm1d
            "beta": jnp.zeros((fout,), jnp.float32),
        })
    key, kw = jax.random.split(key)
    h_last = h_dims[-1] if len(h_dims) > 0 else x_dim
    params["z_layer"] = {"w": xavier_normal(kw, h_last, z_dim),
                         "b": jnp.zeros((1, z_dim), jnp.float32)}
    return params


# ------------------------------- pure-JAX ref ---------------------------------

def encoder_forward_ref(params, x):
    """Faithful Linear->BN(train)->ReLU ... ->Linear reference.

    Dot inputs are cast to bf16 (f32 accumulation) to mirror the kernel's
    documented MXU precision, so the comparison stays tight.
    """
    a = x
    en_h = []
    for layer in params["hidden"]:
        y = jnp.dot(a.astype(jnp.bfloat16), layer["w"].astype(jnp.bfloat16),
                    preferred_element_type=jnp.float32) + layer["b"]
        m = jnp.mean(y, axis=0, keepdims=True)
        v = jnp.mean((y - m) ** 2, axis=0, keepdims=True)   # biased variance
        y = (y - m) / jnp.sqrt(v + 1e-5) * layer["gamma"] + layer["beta"]
        a = jnp.maximum(y, 0.0)
        en_h.append(a)
    h = en_h[-1] if en_h else x
    z = jnp.dot(h.astype(jnp.bfloat16), params["z_layer"]["w"].astype(jnp.bfloat16),
                preferred_element_type=jnp.float32) + params["z_layer"]["b"]
    return en_h, z


# ----------------------------------- main -------------------------------------

if __name__ == "__main__":
    # dims = [x_dim, [hidden dims], z_dim]
    dims = [16, [32, 32], 8]
    batch = 8

    key = jax.random.PRNGKey(0)
    key, kx, kp = jax.random.split(key, 3)
    x = jax.random.normal(kx, (batch, dims[0]), dtype=jnp.float32)
    params = init_encoder_params(kp, dims)

    en_h, z = encoder_forward(params, x)
    jax.block_until_ready(z)

    # correctness check against pure-JAX reference
    r_en_h, r_z = encoder_forward_ref(params, x)
    for a, b in zip(en_h + [z], r_en_h + [r_z]):
        assert jnp.allclose(a, b, atol=2e-3, rtol=2e-3), "mismatch vs reference"

    print("KERNEL_OK")
</pallas_src>

<mosaic_0001>
module attributes {stable_mosaic.version = 11 : i64} {
  func.func @kernel(%arg0: memref<8x16xf32, #tpu.memory_space<vmem>>, %arg1: memref<16x32xbf16, #tpu.memory_space<vmem>>, %arg2: memref<32x32xbf16, #tpu.memory_space<vmem>>, %arg3: memref<32x8xbf16, #tpu.memory_space<vmem>>, %arg4: memref<5x32xf32, #tpu.memory_space<vmem>>, %arg5: memref<8x128xf32, #tpu.memory_space<vmem>>) attributes {dimension_semantics = [], scalar_prefetch = 0 : i64, scratch_operands = 0 : i64, tpu.core_type = #tpu.core_type<tc>} {
    %c0 = arith.constant 0 : index
    %c0_0 = arith.constant 0 : index
    %0 = vector.load %arg0[%c0, %c0_0] : memref<8x16xf32, #tpu.memory_space<vmem>>, vector<8x16xf32>
    %c0_1 = arith.constant 0 : index
    %c0_2 = arith.constant 0 : index
    %1 = vector.load %arg4[%c0_1, %c0_2] : memref<5x32xf32, #tpu.memory_space<vmem>>, vector<5x32xf32>
    %2 = arith.truncf %0 : vector<8x16xf32> to vector<8x16xbf16>
    %c0_3 = arith.constant 0 : index
    %c0_4 = arith.constant 0 : index
    %3 = vector.load %arg1[%c0_3, %c0_4] : memref<16x32xbf16, #tpu.memory_space<vmem>>, vector<16x32xbf16>
    %cst = arith.constant dense<0.000000e+00> : vector<8x32xf32>
    %4 = tpu.matmul %2, %3, %cst {dimension_numbers = #tpu.dot_dimension_numbers<[1], [0], [0], [1], [0, 0, 1, 1], [], []>} : vector<8x16xbf16>, vector<16x32xbf16>, vector<8x32xf32> -> vector<8x32xf32>
    %cst_5 = arith.constant dense<0.000000e+00> : vector<32xf32>
    %5 = vector.multi_reduction <add>, %4, %cst_5 [0] : vector<8x32xf32> to vector<32xf32>
    %6 = vector.shape_cast %5 : vector<32xf32> to vector<1x32xf32>
    %7 = arith.mulf %4, %4 : vector<8x32xf32>
    %cst_6 = arith.constant dense<0.000000e+00> : vector<32xf32>
    %8 = vector.multi_reduction <add>, %7, %cst_6 [0] : vector<8x32xf32> to vector<32xf32>
    %9 = vector.shape_cast %8 : vector<32xf32> to vector<1x32xf32>
    %cst_7 = arith.constant 1.250000e-01 : f32
    %10 = vector.broadcast %cst_7 : f32 to vector<1x32xf32>
    %11 = arith.mulf %6, %10 : vector<1x32xf32>
    %cst_8 = arith.constant 1.250000e-01 : f32
    %12 = vector.broadcast %cst_8 : f32 to vector<1x32xf32>
    %13 = arith.mulf %9, %12 : vector<1x32xf32>
    %14 = arith.mulf %11, %11 : vector<1x32xf32>
    %15 = arith.subf %13, %14 : vector<1x32xf32>
    %cst_9 = arith.constant 0.000000e+00 : f32
    %16 = vector.broadcast %cst_9 : f32 to vector<1x32xf32>
    %17 = arith.maximumf %15, %16 : vector<1x32xf32>
    %18 = vector.extract_strided_slice %1 {offsets = [0, 0], sizes = [1, 32], strides = [1, 1]} : vector<5x32xf32> to vector<1x32xf32>
    %19 = vector.extract_strided_slice %1 {offsets = [1, 0], sizes = [1, 32], strides = [1, 1]} : vector<5x32xf32> to vector<1x32xf32>
    %cst_10 = arith.constant 9.99999974E-6 : f32
    %20 = vector.broadcast %cst_10 : f32 to vector<1x32xf32>
    %21 = arith.addf %17, %20 : vector<1x32xf32>
    %22 = math.rsqrt %21 : vector<1x32xf32>
    %23 = arith.mulf %18, %22 : vector<1x32xf32>
    %24 = arith.mulf %11, %23 : vector<1x32xf32>
    %25 = arith.subf %19, %24 : vector<1x32xf32>
    %26 = vector.broadcast %23 : vector<1x32xf32> to vector<8x32xf32>
    %27 = arith.mulf %4, %26 : vector<8x32xf32>
    %28 = vector.broadcast %25 : vector<1x32xf32> to vector<8x32xf32>
    %29 = arith.addf %27, %28 : vector<8x32xf32>
    %cst_11 = arith.constant 0.000000e+00 : f32
    %30 = vector.broadcast %cst_11 : f32 to vector<8x32xf32>
    %31 = arith.maximumf %29, %30 : vector<8x32xf32>
    %32 = arith.truncf %31 : vector<8x32xf32> to vector<8x32xbf16>
    %c0_12 = arith.constant 0 : index
    %c0_13 = arith.constant 0 : index
    %33 = vector.load %arg2[%c0_12, %c0_13] : memref<32x32xbf16, #tpu.memory_space<vmem>>, vector<32x32xbf16>
    %cst_14 = arith.constant dense<0.000000e+00> : vector<8x32xf32>
    %34 = tpu.matmul %32, %33, %cst_14 {dimension_numbers = #tpu.dot_dimension_numbers<[1], [0], [0], [1], [0, 0, 1, 1], [], []>} : vector<8x32xbf16>, vector<32x32xbf16>, vector<8x32xf32> -> vector<8x32xf32>
    %cst_15 = arith.constant dense<0.000000e+00> : vector<32xf32>
    %35 = vector.multi_reduction <add>, %34, %cst_15 [0] : vector<8x32xf32> to vector<32xf32>
    %36 = vector.shape_cast %35 : vector<32xf32> to vector<1x32xf32>
    %37 = arith.mulf %34, %34 : vector<8x32xf32>
    %cst_16 = arith.constant dense<0.000000e+00> : vector<32xf32>
    %38 = vector.multi_reduction <add>, %37, %cst_16 [0] : vector<8x32xf32> to vector<32xf32>
    %39 = vector.shape_cast %38 : vector<32xf32> to vector<1x32xf32>
    %cst_17 = arith.constant 1.250000e-01 : f32
    %40 = vector.broadcast %cst_17 : f32 to vector<1x32xf32>
    %41 = arith.mulf %36, %40 : vector<1x32xf32>
    %cst_18 = arith.constant 1.250000e-01 : f32
    %42 = vector.broadcast %cst_18 : f32 to vector<1x32xf32>
    %43 = arith.mulf %39, %42 : vector<1x32xf32>
    %44 = arith.mulf %41, %41 : vector<1x32xf32>
    %45 = arith.subf %43, %44 : vector<1x32xf32>
    %cst_19 = arith.constant 0.000000e+00 : f32
    %46 = vector.broadcast %cst_19 : f32 to vector<1x32xf32>
    %47 = arith.maximumf %45, %46 : vector<1x32xf32>
    %48 = vector.extract_strided_slice %1 {offsets = [2, 0], sizes = [1, 32], strides = [1, 1]} : vector<5x32xf32> to vector<1x32xf32>
    %49 = vector.extract_strided_slice %1 {offsets = [3, 0], sizes = [1, 32], strides = [1, 1]} : vector<5x32xf32> to vector<1x32xf32>
    %cst_20 = arith.constant 9.99999974E-6 : f32
    %50 = vector.broadcast %cst_20 : f32 to vector<1x32xf32>
    %51 = arith.addf %47, %50 : vector<1x32xf32>
    %52 = math.rsqrt %51 : vector<1x32xf32>
    %53 = arith.mulf %48, %52 : vector<1x32xf32>
    %54 = arith.mulf %41, %53 : vector<1x32xf32>
    %55 = arith.subf %49, %54 : vector<1x32xf32>
    %56 = vector.broadcast %53 : vector<1x32xf32> to vector<8x32xf32>
    %57 = arith.mulf %34, %56 : vector<8x32xf32>
    %58 = vector.broadcast %55 : vector<1x32xf32> to vector<8x32xf32>
    %59 = arith.addf %57, %58 : vector<8x32xf32>
    %cst_21 = arith.constant 0.000000e+00 : f32
    %60 = vector.broadcast %cst_21 : f32 to vector<8x32xf32>
    %61 = arith.maximumf %59, %60 : vector<8x32xf32>
    %62 = vector.extract_strided_slice %1 {offsets = [4, 0], sizes = [1, 8], strides = [1, 1]} : vector<5x32xf32> to vector<1x8xf32>
    %63 = arith.truncf %61 : vector<8x32xf32> to vector<8x32xbf16>
    %c0_22 = arith.constant 0 : index
    %c0_23 = arith.constant 0 : index
    %64 = vector.load %arg3[%c0_22, %c0_23] : memref<32x8xbf16, #tpu.memory_space<vmem>>, vector<32x8xbf16>
    %cst_24 = arith.constant dense<0.000000e+00> : vector<8x8xf32>
    %65 = tpu.matmul %63, %64, %cst_24 {dimension_numbers = #tpu.dot_dimension_numbers<[1], [0], [0], [1], [0, 0, 1, 1], [], []>} : vector<8x32xbf16>, vector<32x8xbf16>, vector<8x8xf32> -> vector<8x8xf32>
    %66 = vector.broadcast %62 : vector<1x8xf32> to vector<8x8xf32>
    %67 = arith.addf %65, %66 : vector<8x8xf32>
    %cst_25 = arith.constant 0.000000e+00 : f32
    %68 = vector.broadcast %cst_25 : f32 to vector<8x56xf32>
    %69 = tpu.concatenate %31, %61, %67, %68 in 1 : vector<8x32xf32>, vector<8x32xf32>, vector<8x8xf32>, vector<8x56xf32> -> vector<8x128xf32>
    %c0_26 = arith.constant 0 : index
    %c0_27 = arith.constant 0 : index
    %70 = vector.load %arg5[%c0_26, %c0_27] : memref<8x128xf32, #tpu.memory_space<vmem>>, vector<8x128xf32>
    tpu.vector_store %arg5[%c0_26, %c0_27], %69 {strides = array<i32>} : memref<8x128xf32, #tpu.memory_space<vmem>>, vector<8x128xf32>,
    return
  }
}

</mosaic_0001>

<llo_original>
// kernel: tpu_custom_call.1
$region0: #{tpu_custom_call.1}
  #allocation0 [shape = 'u32[]', space=smem, size = 0x4, offset = 0x4, fixed_abs, tag = 'smem constant byte address 0x4 - core index']
  #allocation1 [shape = 'u32[144,128]{1,0:T(1,128)}', space=vmem, size = 0x12000, scoped, tag = 'internal scratch']
  %s0 = inlined_call_operand.vmem [shape: f32[8,16], index: 0, kind: input, shape index: {}]
  %s1 = inlined_call_operand.hbm [shape: bf16[16,32], index: 1, kind: input, shape index: {}]
  %s2 = inlined_call_operand.vmem [shape: bf16[32,32], index: 2, kind: input, shape index: {}]
  %s3 = inlined_call_operand.vmem [shape: bf16[32,8], index: 3, kind: input, shape index: {}]
  %s4 = inlined_call_operand.vmem [shape: f32[5,32], index: 4, kind: input, shape index: {}]
  %s5 = inlined_call_operand.hbm [shape: f32[8,128], index: 5, kind: output, shape index: {}]
  %s6 = sld [smem:[#allocation0]]
  $region34: #{tpu_custom_call.1} parent=0
    _
  %s8 = ssub.s32 1, %s6
  %s9 = scalar_select 0, %s8, %s6
  $region1: #{tpu_custom_call.1} parent=0
    #allocation2 [shape = 'u8[4096]{0}', space=vmem, size = 0x1000, scoped, tag = 'input window, operand 1, single buffered']
    #allocation3 [shape = 's32[1]{0}', space=sflag, size = 0x4, scoped, tag = 'scoped memory for tpu_custom_call.1']
    #allocation4 [shape = 's32[1]{0}', space=sflag, size = 0x4, scoped, tag = 'scoped memory for tpu_custom_call.1']
    #allocation5 [shape = 'u8[4096]{0}', space=vmem, size = 0x1000, scoped, tag = 'output window, operand 0, single buffered']
    %10 = vsyncpa [#allocation3], 0
    %11 = vsyncpa [#allocation4], 0
    // Predicated region
    $region2: #{tpu_custom_call.1} parent=1 // pred_check
      _
    $region3: #{tpu_custom_call.1} parent=1 // pred_check_branch
      %13 = sbr.rel (0) target = $region5
    $region4: #{tpu_custom_call.1} parent=1 // pred_region
      _
    $region5: #{tpu_custom_call.1} parent=1 // pred_fallthru
      _
    // Predicated region
    $region6: #{tpu_custom_call.1} parent=1 // pred_check
      _
    $region7: #{tpu_custom_call.1} parent=1 // pred_check_branch
      %15 = sbr.rel (0) target = $region9
    $region8: #{tpu_custom_call.1} parent=1 // pred_region
      %s17 = ssub.s32 128, 128
      %18 = vsyncadd [#allocation3], %s17
      %s19 = sshll.u32 [#allocation2], 4
      %s20 = int_to_ptr.vmem [resolvable:$true] %s19
      %25 = dma.hbm_to_vmem [thread:$0]  %s1, 128, %s20, [#allocation3], 64, 64, 4
    $region9: #{tpu_custom_call.1} parent=1 // pred_fallthru
      _
    // Predicated region
    $region10: #{tpu_custom_call.1} parent=1 // pred_check
      _
    $region11: #{tpu_custom_call.1} parent=1 // pred_check_branch
      %27 = sbr.rel (0) target = $region13
    $region12: #{tpu_custom_call.1} parent=1 // pred_region
      _
    $region13: #{tpu_custom_call.1} parent=1 // pred_fallthru
      _
    // Predicated region
    $region14: #{tpu_custom_call.1} parent=1 // pred_check
      _
    $region15: #{tpu_custom_call.1} parent=1 // pred_check_branch
      %29 = sbr.rel (0) target = $region17
    $region16: #{tpu_custom_call.1} parent=1 // pred_region
      _
    $region17: #{tpu_custom_call.1} parent=1 // pred_fallthru
      _
    // Predicated region
    $region18: #{tpu_custom_call.1} parent=1 // pred_check
      _
    $region19: #{tpu_custom_call.1} parent=1 // pred_check_branch
      %31 = sbr.rel (0) target = $region21
    $region20: #{tpu_custom_call.1} parent=1 // pred_region
      _
    $region21: #{tpu_custom_call.1} parent=1 // pred_fallthru
      _
    // Predicated region
    $region22: #{tpu_custom_call.1} parent=1 // pred_check
      _
    $region23: #{tpu_custom_call.1} parent=1 // pred_check_branch
      %33 = sbr.rel (0) target = $region25
    $region24: #{tpu_custom_call.1} parent=1 // pred_region
      %34 = dma.done [#allocation3], 128
    $region25: #{tpu_custom_call.1} parent=1 // pred_fallthru
      _
    %v36 = vld [vmem:[%s0] sm:$0xff]
    %v37 = vld [vmem:[%s4] sm:$0x1f]
    %v38 = vpack.c.bf16 %v36, %v36
    %v39 = vld [vmem:[#allocation2] sm:$0xf]
    %v40 = vld [vmem:[#allocation2 + $0x4] sm:$0xf]
    %v43 = vunpack.c.l.b16 %v39
    %v44 = vunpack.c.l.b16 %v40
    %v45 = vpack.c.b16 %v44, %v43
    %vm47 = vcmask 130048
    %v49 = vsel %vm47, %v38, 0
    %51 = vmatprep.subr.bf16.mxu0 0
    %52 = vmatpush1.bf16.msra.mxu0 %v45
    %53 = vmatprep.subr.bf16.mxu0 0
    %54 = vmatpush1.bf16.msra.mxu0 0
    %55 = vmatprep.subr.bf16.mxu0 0
    %56 = vmatpush1.bf16.msra.mxu0 0
    %57 = vmatprep.subr.bf16.mxu0 0
    %58 = vmatpush1.bf16.msra.mxu0 0
    %59 = vmatprep.subr.bf16.mxu0 0
    %60 = vmatpush1.bf16.msra.mxu0 0
    %61 = vmatprep.subr.bf16.mxu0 0
    %62 = vmatpush1.bf16.msra.mxu0 0
    %63 = vmatprep.subr.bf16.mxu0 0
    %64 = vmatpush1.bf16.msra.mxu0 0
    %65 = vmatprep.subr.bf16.mxu0 0
    %66 = vmatpush1.bf16.msra.mxu0 0
    %67 = vmatprep.subr.bf16.mxu0 0
    %68 = vmatpush1.bf16.msra.mxu0 0
    %69 = vmatprep.subr.bf16.mxu0 0
    %70 = vmatpush1.bf16.msra.mxu0 0
    %71 = vmatprep.subr.bf16.mxu0 0
    %72 = vmatpush1.bf16.msra.mxu0 0
    %73 = vmatprep.subr.bf16.mxu0 0
    %74 = vmatpush1.bf16.msra.mxu0 0
    %75 = vmatprep.subr.bf16.mxu0 0
    %76 = vmatpush1.bf16.msra.mxu0 0
    %77 = vmatprep.subr.bf16.mxu0 0
    %78 = vmatpush1.bf16.msra.mxu0 0
    %79 = vmatprep.subr.bf16.mxu0 0
    %80 = vmatpush1.bf16.msra.mxu0 0
    %81 = vmatprep.subr.bf16.mxu0 0
    %82 = vmatpush1.bf16.msra.mxu0 0
    %83 = vmatprep.mubr.bf16.mxu0 0
    %84 = vmatmul.mubr.bf16.gmra.mrb[0].mxu0 %v49
    %v85 = vpop.f32.mrb[0].mxu0
    %v86 = vadd.f32 0.0, %v85
    %v87 = vpop.f32.mrb[0].mxu0
    %v88 = vpop.f32.mrb[0].mxu0
    %v89 = vpop.f32.mrb[0].mxu0
    %90 = vdwg.mxu0
    %vm91 = vcmask 261120
    %v92 = vsel %vm91, %v86, 0.0
    %v93 = vrot.slane %v92, 4
    %v94 = vadd.f32 %v92, %v93
    %v95 = vrot.slane %v94, 2
    %v96 = vadd.f32 %v94, %v95
    %v97 = vrot.slane %v96, 1
    %v98 = vadd.f32 %v96, %v97
    %v99 = vmul.f32 %v86, %v86
    %v100 = vsel %vm91, %v99, 0.0
    %v101 = vrot.slane %v100, 4
    %v102 = vadd.f32 %v100, %v101
    %v103 = vrot.slane %v102, 2
    %v104 = vadd.f32 %v102, %v103
    %v105 = vrot.slane %v104, 1
    %v106 = vadd.f32 %v104, %v105
    %v107 = vmul.f32 %v98, 0.125
    %v108 = vmul.f32 %v106, 0.125
    %v109 = vmul.f32 %v107, %v107
    %v110 = vsub.f32 %v108, %v109
    %v111 = vmax.f32 %v110, 0.0
    %v112 = vadd.f32 %v111, 1e-05
    %v113 = vrsqrt.pop %v112
    %v114 = vmul.f32 %v37, %v113
    %v115 = vmul.f32 %v107, %v114
    %v117 = vrot.slane %v115, 7
    %v119 = vsub.f32 %v37, %v117
    %v120 = vlaneseq
    %v121 = vshrl.u32 %v120, 7
    %v122 = vsub.s32 0, %v121
    %v123 = vrot.slane %v114, %v122
    %v124 = vmul.f32 %v86, %v123
    %v125 = vlaneseq
    %v126 = vshrl.u32 %v125, 7
    %v127 = vsub.s32 1, %v126
    %v128 = vrot.slane %v119, %v127
    %v129 = vadd.f32 %v124, %v128
    %v130 = vmax.f32 %v129, 0.0
    %v131 = vpack.c.bf16 %v130, %v130
    %v132 = vld [vmem:[%s2] sm:$0xf]
    %v133 = vld [vmem:[%s2 + $0x4] sm:$0xf]
    %v134 = vld [vmem:[%s2 + $0x8] sm:$0xf]
    %v135 = vld [vmem:[%s2 + $0xc] sm:$0xf]
    %v140 = vunpack.c.l.b16 %v132
    %v141 = vunpack.c.l.b16 %v133
    %v142 = vunpack.c.l.b16 %v134
    %v143 = vunpack.c.l.b16 %v135
    %v144 = vpack.c.b16 %v141, %v140
    %v145 = vpack.c.b16 %v143, %v142
    %v149 = vsel %vm91, %v131, 0
    %151 = vmatprep.subr.bf16.mxu0 0
    %152 = vmatpush1.bf16.msra.mxu0 %v144
    %153 = vmatprep.subr.bf16.mxu0 0
    %154 = vmatpush1.bf16.msra.mxu0 %v145
    %155 = vmatprep.subr.bf16.mxu0 0
    %156 = vmatpush1.bf16.msra.mxu0 0
    %157 = vmatprep.subr.bf16.mxu0 0
    %158 = vmatpush1.bf16.msra.mxu0 0
    %159 = vmatprep.subr.bf16.mxu0 0
    %160 = vmatpush1.bf16.msra.mxu0 0
    %161 = vmatprep.subr.bf16.mxu0 0
    %162 = vmatpush1.bf16.msra.mxu0 0
    %163 = vmatprep.subr.bf16.mxu0 0
    %164 = vmatpush1.bf16.msra.mxu0 0
    %165 = vmatprep.subr.bf16.mxu0 0
    %166 = vmatpush1.bf16.msra.mxu0 0
    %167 = vmatprep.subr.bf16.mxu0 0
    %168 = vmatpush1.bf16.msra.mxu0 0
    %169 = vmatprep.subr.bf16.mxu0 0
    %170 = vmatpush1.bf16.msra.mxu0 0
    %171 = vmatprep.subr.bf16.mxu0 0
    %172 = vmatpush1.bf16.msra.mxu0 0
    %173 = vmatprep.subr.bf16.mxu0 0
    %174 = vmatpush1.bf16.msra.mxu0 0
    %175 = vmatprep.subr.bf16.mxu0 0
    %176 = vmatpush1.bf16.msra.mxu0 0
    %177 = vmatprep.subr.bf16.mxu0 0
    %178 = vmatpush1.bf16.msra.mxu0 0
    %179 = vmatprep.subr.bf16.mxu0 0
    %180 = vmatpush1.bf16.msra.mxu0 0
    %181 = vmatprep.subr.bf16.mxu0 0
    %182 = vmatpush1.bf16.msra.mxu0 0
    %183 = vmatprep.mubr.bf16.mxu0 0
    %184 = vmatmul.mubr.bf16.gmra.mrb[0].mxu0 %v149
    %v185 = vpop.f32.mrb[0].mxu0
    %v186 = vadd.f32 0.0, %v185
    %v187 = vpop.f32.mrb[0].mxu0
    %v188 = vpop.f32.mrb[0].mxu0
    %v189 = vpop.f32.mrb[0].mxu0
    %190 = vdwg.mxu0
    %v191 = vsel %vm91, %v186, 0.0
    %v192 = vrot.slane %v191, 4
    %v193 = vadd.f32 %v191, %v192
    %v194 = vrot.slane %v193, 2
    %v195 = vadd.f32 %v193, %v194
    %v196 = vrot.slane %v195, 1
    %v197 = vadd.f32 %v195, %v196
    %v198 = vmul.f32 %v186, %v186
    %v199 = vsel %vm91, %v198, 0.0
    %v200 = vrot.slane %v199, 4
    %v201 = vadd.f32 %v199, %v200
    %v202 = vrot.slane %v201, 2
    %v203 = vadd.f32 %v201, %v202
    %v204 = vrot.slane %v203, 1
    %v205 = vadd.f32 %v203, %v204
    %v206 = vmul.f32 %v197, 0.125
    %v207 = vmul.f32 %v205, 0.125
    %v208 = vmul.f32 %v206, %v206
    %v209 = vsub.f32 %v207, %v208
    %v210 = vmax.f32 %v209, 0.0
    %v211 = vadd.f32 %v210, 1e-05
    %v212 = vrsqrt.pop %v211
    %v213 = vmul.f32 %v37, %v212
    %v214 = vmul.f32 %v206, %v213
    %v216 = vrot.slane %v214, 7
    %v218 = vsub.f32 %v37, %v216
    %v219 = vlaneseq
    %v220 = vshrl.u32 %v219, 7
    %v221 = vsub.s32 2, %v220
    %v222 = vrot.slane %v213, %v221
    %v223 = vmul.f32 %v186, %v222
    %v224 = vlaneseq
    %v225 = vshrl.u32 %v224, 7
    %v226 = vsub.s32 3, %v225
    %v227 = vrot.slane %v218, %v226
    %v228 = vadd.f32 %v223, %v227
    %v229 = vmax.f32 %v228, 0.0
    %v230 = vpack.c.bf16 %v229, %v229
    %v231 = vld [vmem:[%s3] sm:$0xf]
    %v232 = vld [vmem:[%s3 + $0x4] sm:$0xf]
    %v233 = vld [vmem:[%s3 + $0x8] sm:$0xf]
    %v234 = vld [vmem:[%s3 + $0xc] sm:$0xf]
    %v235 = vlaneseq
    %v236 = vshrl.u32 %v235, 7
    %v237 = vsub.s32 4, %v236
    %v238 = vrot.slane %v37, %v237
    %v243 = vunpack.c.l.b16 %v231
    %v244 = vunpack.c.l.b16 %v232
    %v245 = vunpack.c.l.b16 %v233
    %v246 = vunpack.c.l.b16 %v234
    %v247 = vpack.c.b16 %v244, %v243
    %v248 = vpack.c.b16 %v246, %v245
    %v252 = vsel %vm91, %v230, 0
    %254 = vmatprep.subr.bf16.mxu0 0
    %255 = vmatpush1.bf16.msra.mxu0 %v247
    %256 = vmatprep.subr.bf16.mxu0 0
    %257 = vmatpush1.bf16.msra.mxu0 %v248
    %258 = vmatprep.subr.bf16.mxu0 0
    %259 = vmatpush1.bf16.msra.mxu0 0
    %260 = vmatprep.subr.bf16.mxu0 0
    %261 = vmatpush1.bf16.msra.mxu0 0
    %262 = vmatprep.subr.bf16.mxu0 0
    %263 = vmatpush1.bf16.msra.mxu0 0
    %264 = vmatprep.subr.bf16.mxu0 0
    %265 = vmatpush1.bf16.msra.mxu0 0
    %266 = vmatprep.subr.bf16.mxu0 0
    %267 = vmatpush1.bf16.msra.mxu0 0
    %268 = vmatprep.subr.bf16.mxu0 0
    %269 = vmatpush1.bf16.msra.mxu0 0
    %270 = vmatprep.subr.bf16.mxu0 0
    %271 = vmatpush1.bf16.msra.mxu0 0
    %272 = vmatprep.subr.bf16.mxu0 0
    %273 = vmatpush1.bf16.msra.mxu0 0
    %274 = vmatprep.subr.bf16.mxu0 0
    %275 = vmatpush1.bf16.msra.mxu0 0
    %276 = vmatprep.subr.bf16.mxu0 0
    %277 = vmatpush1.bf16.msra.mxu0 0
    %278 = vmatprep.subr.bf16.mxu0 0
    %279 = vmatpush1.bf16.msra.mxu0 0
    %280 = vmatprep.subr.bf16.mxu0 0
    %281 = vmatpush1.bf16.msra.mxu0 0
    %282 = vmatprep.subr.bf16.mxu0 0
    %283 = vmatpush1.bf16.msra.mxu0 0
    %284 = vmatprep.subr.bf16.mxu0 0
    %285 = vmatpush1.bf16.msra.mxu0 0
    %286 = vmatprep.mubr.bf16.mxu0 0
    %287 = vmatmul.mubr.bf16.gmra.mrb[0].mxu0 %v252
    %v288 = vpop.f32.mrb[0].mxu0
    %v289 = vadd.f32 %v238, %v288
    %v290 = vpop.f32.mrb[0].mxu0
    %v291 = vpop.f32.mrb[0].mxu0
    %v292 = vpop.f32.mrb[0].mxu0
    %293 = vdwg.mxu0
    %295 = vrot.lane.b32.xlu0 %v229, 32
    %v296 = vpop.permute.xlu0 %295
    %299 = vrot.lane.b32.xlu0 %v289, 64
    %v300 = vpop.permute.xlu0 %299
    %v302 = vsel %vm91, %v130, %v296
    %vm303 = vcmask 523264
    %v304 = vsel %vm303, %v302, %v300
    %vm305 = vcmask 588800
    %v306 = vsel %vm305, %v304, 0.0
    %307 = vst [vmem:[#allocation5] sm:$0xff] %v306
    // Predicated region
    $region26: #{tpu_custom_call.1} parent=1 // pred_check
      _
    $region27: #{tpu_custom_call.1} parent=1 // pred_check_branch
      %309 = sbr.rel (0) target = $region29
    $region28: #{tpu_custom_call.1} parent=1 // pred_region
      %s311 = ssub.s32 128, 128
      %312 = vsyncadd [#allocation4], %s311
      %s314 = sshll.u32 [#allocation5], 4
      %s315 = int_to_ptr.vmem [resolvable:$true] %s314
      %317 = dma.vmem_to_hbm [thread:$0]  %s315, 128, %s5, [#allocation4]
    $region29: #{tpu_custom_call.1} parent=1 // pred_fallthru
      _
    // Predicated region
    $region30: #{tpu_custom_call.1} parent=1 // pred_check
      _
    $region31: #{tpu_custom_call.1} parent=1 // pred_check_branch
      %319 = sbr.rel (0) target = $region33
    $region32: #{tpu_custom_call.1} parent=1 // pred_region
      %320 = dma.done [#allocation4], 128
    $region33: #{tpu_custom_call.1} parent=1 // pred_fallthru
      _
    %321 = vsyncpa [#allocation3], 1
    %322 = vsyncpa [#allocation4], 1

</llo_original>
